<compile_context>
chip_gen: v6e
topology: v6e:2x2x1
jax: 0.10.0
libtpu: 0.0.40
codegen_flags: <defaults>
</compile_context>

<pallas_src>
import jax
import jax.numpy as jnp
import numpy as np
from jax.experimental import pallas as pl
from jax.experimental.pallas import tpu as pltpu


_TARGET_PLANE_BYTES = 768 * 1024        # per (th, w) plane tile
_VMEM_LIMIT_BYTES = 32 * 1024 * 1024    # covers ~12 MiB double-buffered working set


def _pick_rows(h, lanes, itemsize):
    """Rows per spatial tile: a divisor of h that is a multiple of 8 (or the full
    extent), sized so one (rows, lanes) plane stays under _TARGET_PLANE_BYTES."""
    max_rows = max(1, _TARGET_PLANE_BYTES // max(1, lanes * itemsize))
    if h <= max_rows:
        return h
    cands = [d for d in range(8, h, 8) if h % d == 0]
    fitting = [d for d in cands if d <= max_rows]
    if fitting:
        return max(fitting)
    if cands:
        return min(cands)   # smallest sublane-aligned divisor (slightly over budget)
    return h                # no multiple-of-8 divisor: fall back to a single tile


def _haar_fwd_kernel(x_ref, o_ref):
    # x_ref: (2, 2, th, w) patch planes a,b,c,d ; o_ref: (4, th, w) subbands.
    a = x_ref[0, 0, :, :]
    b = x_ref[0, 1, :, :]
    c = x_ref[1, 0, :, :]
    d = x_ref[1, 1, :, :]
    # Two-stage butterfly; the 1/4 is folded into the first stage.
    s0 = (a + b) * 0.25
    d0 = (a - b) * 0.25
    s1 = (c + d) * 0.25
    d1 = (c - d) * 0.25
    o_ref[0, :, :] = s0 + s1     # LL: (a + b + c + d) / 4
    o_ref[1, :, :] = d0 + d1     # HL: (a - b + c - d) / 4
    o_ref[2, :, :] = s0 - s1     # LH: (a + b - c - d) / 4
    o_ref[3, :, :] = d0 - d1     # HH: (a - b - c + d) / 4


def _haar_rev_kernel(x_ref, o_ref):
    # x_ref: (4, th, W) subbands ; o_ref: (2, 2, th, W) patch planes.
    ll = x_ref[0, :, :]
    hl = x_ref[1, :, :]
    lh = x_ref[2, :, :]
    hh = x_ref[3, :, :]
    u0 = ll + hl
    u1 = ll - hl
    v0 = lh + hh
    v1 = lh - hh
    o_ref[0, 0, :, :] = u0 + v0   # a = LL + HL + LH + HH
    o_ref[0, 1, :, :] = u1 + v1   # b = LL - HL + LH - HH
    o_ref[1, 0, :, :] = u0 - v0   # c = LL + HL - LH - HH
    o_ref[1, 1, :, :] = u1 - v1   # d = LL - HL - LH + HH


def _haar_forward_pallas(patches):
    """patches: (2, 2, B, C, h, w) patch planes -> (B, 4, C, h, w) subbands / 4."""
    _, _, B, C, h, w = patches.shape
    th = _pick_rows(h, w, patches.dtype.itemsize)
    grid = (B, C, h // th)
    return pl.pallas_call(
        _haar_fwd_kernel,
        out_shape=jax.ShapeDtypeStruct((B, 4, C, h, w), patches.dtype),
        grid=grid,
        in_specs=[pl.BlockSpec((2, 2, None, None, th, w),
                               lambda b, c, t: (0, 0, b, c, t, 0))],
        out_specs=pl.BlockSpec((None, 4, None, th, w),
                               lambda b, c, t: (b, 0, c, t, 0)),
        compiler_params=pltpu.CompilerParams(
            dimension_semantics=("parallel", "parallel", "parallel"),
            vmem_limit_bytes=_VMEM_LIMIT_BYTES),
    )(patches)


def _haar_reverse_pallas(subbands):
    """subbands: (B, 4, C, H, W) -> (2, 2, B, C, H, W) reconstructed patch planes."""
    B, _, C, H, W = subbands.shape
    th = _pick_rows(H, W, subbands.dtype.itemsize)
    grid = (B, C, H // th)
    return pl.pallas_call(
        _haar_rev_kernel,
        out_shape=jax.ShapeDtypeStruct((2, 2, B, C, H, W), subbands.dtype),
        grid=grid,
        in_specs=[pl.BlockSpec((None, 4, None, th, W),
                               lambda b, c, t: (b, 0, c, t, 0))],
        out_specs=pl.BlockSpec((2, 2, None, None, th, W),
                               lambda b, c, t: (0, 0, b, c, t, 0)),
        compiler_params=pltpu.CompilerParams(
            dimension_semantics=("parallel", "parallel", "parallel"),
            vmem_limit_bytes=_VMEM_LIMIT_BYTES),
    )(subbands)


class HaarDownsampling:
    """JAX/Pallas port of the PyTorch HaarDownsampling module (forward pass)."""

    def __init__(self, channel_in):
        self.channel_in = channel_in
        # Deterministic parameter setup, mirroring the PyTorch __init__.
        w = np.ones((4, 1, 2, 2), dtype=np.float32)
        w[1, 0, 0, 1] = -1
        w[1, 0, 1, 1] = -1
        w[2, 0, 1, 0] = -1
        w[2, 0, 1, 1] = -1
        w[3, 0, 1, 0] = -1
        w[3, 0, 0, 1] = -1
        self.haar_weights = jnp.asarray(np.concatenate([w] * channel_in, axis=0))
        self.elements = None
        self.last_jac = None

    def __call__(self, x, rev=False):
        B, C, H, W = x.shape
        if not rev:
            assert C == self.channel_in
            self.elements = C * H * W
            self.last_jac = self.elements / 4 * np.log(1 / 16.0)
            h, w = H // 2, W // 2
            # Only remaining XLA pass: de-interleave the 2x2 pixel patches.
            xr = x.reshape(B, C, h, 2, w, 2)
            patches = jnp.transpose(xr, (3, 5, 0, 1, 2, 4))   # (2, 2, B, C, h, w)
            out = _haar_forward_pallas(patches)                # (B, 4, C, h, w)
            # Free reshape -> output channel order s*C + c (matches PyTorch).
            return out.reshape(B, 4 * C, h, w)
        else:
            cin = self.channel_in
            assert C == 4 * cin
            self.elements = C * H * W
            self.last_jac = self.elements / 4 * np.log(16.0)
            # Free reshape: channel order s*cin + c -> (B, 4, cin, H, W) view.
            subbands = x.reshape(B, 4, cin, H, W)
            out = _haar_reverse_pallas(subbands)               # (2, 2, B, cin, H, W)
            # Only remaining XLA pass: re-interleave the 2x2 pixel patches.
            out = jnp.transpose(out, (2, 3, 4, 0, 5, 1))       # (B, cin, H, 2, W, 2)
            return out.reshape(B, cin, 2 * H, 2 * W)

    def jacobian(self, x, rev=False):
        return self.last_jac


def reference_forward(x, haar_weights, channel_in):
    """Pure-JAX reference matching the PyTorch forward (rev=False)."""
    C = channel_in
    out = jax.lax.conv_general_dilated(
        x, haar_weights, window_strides=(2, 2), padding="VALID",
        dimension_numbers=("NCHW", "OIHW", "NCHW"),
        feature_group_count=C) / 4.0
    B, _, h, w = out.shape
    out = out.reshape(B, C, 4, h, w)
    out = jnp.transpose(out, (0, 2, 1, 3, 4)).reshape(B, 4 * C, h, w)
    return out


if __name__ == "__main__":
    key = jax.random.PRNGKey(0)
    B, C, H, W = 2, 4, 16, 16
    x = jax.random.normal(key, (B, C, H, W), dtype=jnp.float32)

    module = HaarDownsampling(C)

    # Forward (rev=False): Pallas kernel vs. grouped-conv reference.
    y = jax.block_until_ready(module(x, rev=False))
    y_ref = reference_forward(x, module.haar_weights, C)
    np.testing.assert_allclose(np.asarray(y), np.asarray(y_ref),
                               rtol=1e-5, atol=1e-5)
    assert y.shape == (B, 4 * C, H // 2, W // 2)

    # Reverse (rev=True): Haar is orthogonal up to the 1/4 factor, so the
    # roundtrip must reconstruct the input exactly (validates the rev path).
    x_rec = jax.block_until_ready(module(y, rev=True))
    np.testing.assert_allclose(np.asarray(x_rec), np.asarray(x),
                               rtol=1e-5, atol=1e-5)

    print("KERNEL_OK")
</pallas_src>

<mosaic_0001>
module attributes {stable_mosaic.version = 11 : i64} {
  func.func @_haar_fwd_kernel(%arg0: i32, %arg1: i32, %arg2: i32, %arg3: memref<2x2x1x1x8x8xf32, #tpu.memory_space<vmem>>, %arg4: memref<1x4x1x8x8xf32, #tpu.memory_space<vmem>>) attributes {dimension_semantics = [#tpu.dimension_semantics<parallel>, #tpu.dimension_semantics<parallel>, #tpu.dimension_semantics<parallel>], iteration_bounds = array<i64: 2, 4, 1>, scalar_prefetch = 0 : i64, scratch_operands = 0 : i64, tpu.core_type = #tpu.core_type<tc>, window_params = [{transform_indices = @transform_0, window_bounds = array<i64: 2, 2, 1, 1, 8, 8>}, {transform_indices = @transform_1, window_bounds = array<i64: 1, 4, 1, 8, 8>}]} {
    %c0 = arith.constant 0 : index
    %c0_0 = arith.constant 0 : index
    %c0_1 = arith.constant 0 : index
    %c0_2 = arith.constant 0 : index
    %c0_3 = arith.constant 0 : index
    %c0_4 = arith.constant 0 : index
    %0 = vector.load %arg3[%c0, %c0_0, %c0_1, %c0_2, %c0_3, %c0_4] : memref<2x2x1x1x8x8xf32, #tpu.memory_space<vmem>>, vector<1x1x1x1x8x8xf32>
    %1 = vector.shape_cast %0 : vector<1x1x1x1x8x8xf32> to vector<8x8xf32>
    %c0_5 = arith.constant 0 : index
    %c1 = arith.constant 1 : index
    %c0_6 = arith.constant 0 : index
    %c0_7 = arith.constant 0 : index
    %c0_8 = arith.constant 0 : index
    %c0_9 = arith.constant 0 : index
    %2 = vector.load %arg3[%c0_5, %c1, %c0_6, %c0_7, %c0_8, %c0_9] : memref<2x2x1x1x8x8xf32, #tpu.memory_space<vmem>>, vector<1x1x1x1x8x8xf32>
    %3 = vector.shape_cast %2 : vector<1x1x1x1x8x8xf32> to vector<8x8xf32>
    %c1_10 = arith.constant 1 : index
    %c0_11 = arith.constant 0 : index
    %c0_12 = arith.constant 0 : index
    %c0_13 = arith.constant 0 : index
    %c0_14 = arith.constant 0 : index
    %c0_15 = arith.constant 0 : index
    %4 = vector.load %arg3[%c1_10, %c0_11, %c0_12, %c0_13, %c0_14, %c0_15] : memref<2x2x1x1x8x8xf32, #tpu.memory_space<vmem>>, vector<1x1x1x1x8x8xf32>
    %5 = vector.shape_cast %4 : vector<1x1x1x1x8x8xf32> to vector<8x8xf32>
    %c1_16 = arith.constant 1 : index
    %c1_17 = arith.constant 1 : index
    %c0_18 = arith.constant 0 : index
    %c0_19 = arith.constant 0 : index
    %c0_20 = arith.constant 0 : index
    %c0_21 = arith.constant 0 : index
    %6 = vector.load %arg3[%c1_16, %c1_17, %c0_18, %c0_19, %c0_20, %c0_21] : memref<2x2x1x1x8x8xf32, #tpu.memory_space<vmem>>, vector<1x1x1x1x8x8xf32>
    %7 = vector.shape_cast %6 : vector<1x1x1x1x8x8xf32> to vector<8x8xf32>
    %8 = arith.addf %1, %3 : vector<8x8xf32>
    %cst = arith.constant 2.500000e-01 : f32
    %9 = vector.broadcast %cst : f32 to vector<8x8xf32>
    %10 = arith.mulf %8, %9 : vector<8x8xf32>
    %11 = arith.subf %1, %3 : vector<8x8xf32>
    %cst_22 = arith.constant 2.500000e-01 : f32
    %12 = vector.broadcast %cst_22 : f32 to vector<8x8xf32>
    %13 = arith.mulf %11, %12 : vector<8x8xf32>
    %14 = arith.addf %5, %7 : vector<8x8xf32>
    %cst_23 = arith.constant 2.500000e-01 : f32
    %15 = vector.broadcast %cst_23 : f32 to vector<8x8xf32>
    %16 = arith.mulf %14, %15 : vector<8x8xf32>
    %17 = arith.subf %5, %7 : vector<8x8xf32>
    %cst_24 = arith.constant 2.500000e-01 : f32
    %18 = vector.broadcast %cst_24 : f32 to vector<8x8xf32>
    %19 = arith.mulf %17, %18 : vector<8x8xf32>
    %20 = arith.addf %10, %16 : vector<8x8xf32>
    %c0_25 = arith.constant 0 : index
    %c0_26 = arith.constant 0 : index
    %c0_27 = arith.constant 0 : index
    %c0_28 = arith.constant 0 : index
    %c0_29 = arith.constant 0 : index
    %21 = vector.load %arg4[%c0_25, %c0_26, %c0_27, %c0_28, %c0_29] : memref<1x4x1x8x8xf32, #tpu.memory_space<vmem>>, vector<1x1x1x8x8xf32>
    %22 = vector.shape_cast %21 : vector<1x1x1x8x8xf32> to vector<8x8xf32>
    %23 = vector.shape_cast %20 : vector<8x8xf32> to vector<1x1x1x8x8xf32>
    tpu.vector_store %arg4[%c0_25, %c0_26, %c0_27, %c0_28, %c0_29], %23 {strides = array<i32>} : memref<1x4x1x8x8xf32, #tpu.memory_space<vmem>>, vector<1x1x1x8x8xf32>,
    %24 = arith.addf %13, %19 : vector<8x8xf32>
    %c0_30 = arith.constant 0 : index
    %c1_31 = arith.constant 1 : index
    %c0_32 = arith.constant 0 : index
    %c0_33 = arith.constant 0 : index
    %c0_34 = arith.constant 0 : index
    %25 = vector.load %arg4[%c0_30, %c1_31, %c0_32, %c0_33, %c0_34] : memref<1x4x1x8x8xf32, #tpu.memory_space<vmem>>, vector<1x1x1x8x8xf32>
    %26 = vector.shape_cast %25 : vector<1x1x1x8x8xf32> to vector<8x8xf32>
    %27 = vector.shape_cast %24 : vector<8x8xf32> to vector<1x1x1x8x8xf32>
    tpu.vector_store %arg4[%c0_30, %c1_31, %c0_32, %c0_33, %c0_34], %27 {strides = array<i32>} : memref<1x4x1x8x8xf32, #tpu.memory_space<vmem>>, vector<1x1x1x8x8xf32>,
    %28 = arith.subf %10, %16 : vector<8x8xf32>
    %c0_35 = arith.constant 0 : index
    %c2 = arith.constant 2 : index
    %c0_36 = arith.constant 0 : index
    %c0_37 = arith.constant 0 : index
    %c0_38 = arith.constant 0 : index
    %29 = vector.load %arg4[%c0_35, %c2, %c0_36, %c0_37, %c0_38] : memref<1x4x1x8x8xf32, #tpu.memory_space<vmem>>, vector<1x1x1x8x8xf32>
    %30 = vector.shape_cast %29 : vector<1x1x1x8x8xf32> to vector<8x8xf32>
    %31 = vector.shape_cast %28 : vector<8x8xf32> to vector<1x1x1x8x8xf32>
    tpu.vector_store %arg4[%c0_35, %c2, %c0_36, %c0_37, %c0_38], %31 {strides = array<i32>} : memref<1x4x1x8x8xf32, #tpu.memory_space<vmem>>, vector<1x1x1x8x8xf32>,
    %32 = arith.subf %13, %19 : vector<8x8xf32>
    %c0_39 = arith.constant 0 : index
    %c3 = arith.constant 3 : index
    %c0_40 = arith.constant 0 : index
    %c0_41 = arith.constant 0 : index
    %c0_42 = arith.constant 0 : index
    %33 = vector.load %arg4[%c0_39, %c3, %c0_40, %c0_41, %c0_42] : memref<1x4x1x8x8xf32, #tpu.memory_space<vmem>>, vector<1x1x1x8x8xf32>
    %34 = vector.shape_cast %33 : vector<1x1x1x8x8xf32> to vector<8x8xf32>
    %35 = vector.shape_cast %32 : vector<8x8xf32> to vector<1x1x1x8x8xf32>
    tpu.vector_store %arg4[%c0_39, %c3, %c0_40, %c0_41, %c0_42], %35 {strides = array<i32>} : memref<1x4x1x8x8xf32, #tpu.memory_space<vmem>>, vector<1x1x1x8x8xf32>,
    return
  }
  func.func @transform_0(%arg0: i32, %arg1: i32, %arg2: i32) -> (i32, i32, i32, i32, i32, i32) {
    %c0_i32 = arith.constant 0 : i32
    %c0_i32_0 = arith.constant 0 : i32
    %c0_i32_1 = arith.constant 0 : i32
    %c0_i32_2 = arith.constant 0 : i32
    return %c0_i32, %c0_i32_0, %arg0, %arg1, %arg2, %c0_i32_1 : i32, i32, i32, i32, i32, i32
  }
  func.func @transform_1(%arg0: i32, %arg1: i32, %arg2: i32) -> (i32, i32, i32, i32, i32) {
    %c0_i32 = arith.constant 0 : i32
    %c0_i32_0 = arith.constant 0 : i32
    %c0_i32_1 = arith.constant 0 : i32
    return %arg0, %c0_i32, %arg1, %arg2, %c0_i32_0 : i32, i32, i32, i32, i32
  }
}

</mosaic_0001>

<llo_original>
// kernel: tpu_custom_call.1
$region0: #{tpu_custom_call.1}
  #allocation0 [shape = 'u32[]', space=smem, size = 0x4, offset = 0x4, fixed_abs, tag = 'smem constant byte address 0x4 - core index']
  #allocation1 [shape = 'u32[144,128]{1,0:T(1,128)}', space=vmem, size = 0x12000, scoped, tag = 'internal scratch']
  %s0 = inlined_call_operand.hbm [shape: f32[2,2,2,4,8,8], index: 0, kind: input, shape index: {}]
  %s1 = inlined_call_operand.hbm [shape: f32[2,4,4,8,8], index: 1, kind: output, shape index: {}]
  %s2 = sld [smem:[#allocation0]]
  $region41: #{tpu_custom_call.1} parent=0
    _
  %s4 = ssub.s32 1, %s2
  %s5 = scalar_select 0, %s4, %s2
  $region1: #{tpu_custom_call.1} parent=0
    #allocation2 [shape = 'u8[32768]{0}', space=vmem, size = 0x8000, scoped, tag = 'input window, operand 0']
    #allocation3 [shape = 's32[2]{0}', space=sflag, size = 0x8, scoped, tag = 'scoped memory for tpu_custom_call.1']
    #allocation4 [shape = 's32[2]{0}', space=sflag, size = 0x8, scoped, tag = 'scoped memory for tpu_custom_call.1']
    #allocation5 [shape = 'u8[32768]{0}', space=vmem, size = 0x8000, scoped, tag = 'output window, operand 0']
    %6 = vsyncpa [#allocation3], 0
    %s7 = scalar_lea.sflag [#allocation3], 1
    %8 = vsyncpa %s7, 0
    %9 = vsyncpa [#allocation4], 0
    %s10 = scalar_lea.sflag [#allocation4], 1
    %11 = vsyncpa %s10, 0
    loop: start=0, step=1, limit=10
    $region2: #{tpu_custom_call.1} parent=1 // loop_pre_header
      _
    $region3: #{tpu_custom_call.1} parent=1 // loop_header
      %s13 = sphi 0, %s17
      %p14 = scmp.ge.s32.totalorder %s13, 10
      %s20 = sphi 0, %s39
      %s21 = sphi 0, %s35
      %s22 = sphi 0, %s31
      %s23 = sphi 0, %s20
      %s24 = sphi 0, %s21
      %s25 = sphi 0, %s22
      %s26 = sphi 0, %s23
      %s27 = sphi 0, %s24
      %s28 = sphi 0, %s25
      %s46 = sphi 0, %s48
      %s49 = sphi 0, %s46
      %s50 = sphi 0, %s49
      %s66 = sphi 0, %s50
      %s76 = sphi 0, %s78
      %s79 = sphi 0, %s76
      %s80 = sphi 0, %s79
      %s96 = sphi 0, %s80
    $region4: #{tpu_custom_call.1} parent=1 // loop_header_branch
      %16 = sbr.rel (%p14) target = $region8
    $region5: #{tpu_custom_call.1} parent=1 // loop_body
      %s18 = ssub.s32 %s13, 1
      %s19 = ssub.s32 %s13, 2
      %s29 = sadd.s32 1, %s22
      %p30 = scmp.ge.s32.totalorder %s29, 1
      %s31 = scalar_select %p30, 0, %s29
      %s32 = sadd.s32 1, %s21
      %s33 = scalar_select %p30, %s32, %s21
      %p34 = scmp.ge.s32.totalorder %s33, 4
      %s35 = scalar_select %p34, 0, %s33
      %s36 = sadd.s32 1, %s20
      %s37 = scalar_select %p34, %s36, %s20
      %p38 = scmp.ge.s32.totalorder %s37, 2
      %s39 = scalar_select %p38, 0, %s37
      %s40 = ssub.s32 %s20, %s39
      %s41 = ssub.s32 %s21, %s35
      %s42 = sor.u32 %s40, %s41
      %s43 = ssub.s32 %s22, %s31
      %s44 = sor.u32 %s42, %s43
      %p45 = scmp.eq.s32.totalorder %s44, 0
      %s47 = sadd.s32 %s46, 1
      %s48 = scalar_select %p45, %s46, %s47
      %p51 = pneg %p45
      %p52 = scmp.eq.s32.totalorder %s13, 7
      %p53 = por %p51, %p52
      %p54 = scmp.ne.s32.totalorder %s46, %s49
      %p55 = scmp.eq.s32.totalorder %s13, 0
      %p56 = por %p54, %p55
      %p57 = scmp.ne.s32.totalorder %s46, %s49
      %p58 = scmp.eq.s32.totalorder %s18, 7
      %p59 = por %p57, %p58
      %p60 = scmp.ne.s32.totalorder %s49, %s50
      %p61 = scmp.eq.s32.totalorder %s18, 0
      %p62 = por %p60, %p61
      %p63 = scmp.ne.s32.totalorder %s49, %s50
      %p64 = scmp.eq.s32.totalorder %s19, 7
      %p65 = por %p63, %p64
      %p67 = scmp.ne.s32.totalorder %s50, %s66
      %p68 = scmp.eq.s32.totalorder %s19, 0
      %p69 = por %p67, %p68
      %s70 = ssub.s32 %s20, %s39
      %s71 = ssub.s32 %s21, %s35
      %s72 = sor.u32 %s70, %s71
      %s73 = ssub.s32 %s22, %s31
      %s74 = sor.u32 %s72, %s73
      %p75 = scmp.eq.s32.totalorder %s74, 0
      %s77 = sadd.s32 %s76, 1
      %s78 = scalar_select %p75, %s76, %s77
      %p81 = pneg %p75
      %p82 = scmp.eq.s32.totalorder %s13, 7
      %p83 = por %p81, %p82
      %p84 = scmp.ne.s32.totalorder %s76, %s79
      %p85 = scmp.eq.s32.totalorder %s13, 0
      %p86 = por %p84, %p85
      %p87 = scmp.ne.s32.totalorder %s76, %s79
      %p88 = scmp.eq.s32.totalorder %s18, 7
      %p89 = por %p87, %p88
      %p90 = scmp.ne.s32.totalorder %s79, %s80
      %p91 = scmp.eq.s32.totalorder %s18, 0
      %p92 = por %p90, %p91
      %p93 = scmp.ne.s32.totalorder %s79, %s80
      %p94 = scmp.eq.s32.totalorder %s19, 7
      %p95 = por %p93, %p94
      %p97 = scmp.ne.s32.totalorder %s80, %s96
      %p98 = scmp.eq.s32.totalorder %s19, 0
      %p99 = por %p97, %p98
      %p100 = scmp.le.s32.totalorder 1, %s13
      %p101 = scmp.lt.s32.totalorder %s13, 9
      %p102 = pnand %p100, %p101
      %p103 = pneg %p102
      // Predicated region
      $region9: #{tpu_custom_call.1} parent=5 // pred_check
        _
      $region10: #{tpu_custom_call.1} parent=5 // pred_check_branch
        %105 = sbr.rel (%p102) target = $region12
      $region11: #{tpu_custom_call.1} parent=5 // pred_region
        %s106 = ssub.s32 %s13, 1
      $region12: #{tpu_custom_call.1} parent=5 // pred_fallthru
        _
      %p107 = scmp.lt.s32.totalorder %s13, 8
      // Predicated region
      $region13: #{tpu_custom_call.1} parent=5 // pred_check
        %p108 = pneg %p107
      $region14: #{tpu_custom_call.1} parent=5 // pred_check_branch
        %110 = sbr.rel (%p108) target = $region16
      $region15: #{tpu_custom_call.1} parent=5 // pred_region
        // Predicated region
        $region17: #{tpu_custom_call.1} parent=15 // pred_check
          %p111 = pneg %p56
        $region18: #{tpu_custom_call.1} parent=15 // pred_check_branch
          %113 = sbr.rel (%p111) target = $region20
        $region19: #{tpu_custom_call.1} parent=15 // pred_region
          %s114 = sand.u32 %s46, 1
          %s115 = scalar_lea.sflag [#allocation3], %s114
          %s116 = sand.u32 %s46, 1
          %s117 = smul.addr %s116, 32
          %s118 = scalar_lea.vmem [#allocation2], %s117
          %s120 = ssub.s32 512, 512
          %121 = vsyncadd %s115, %s120
          %s122 = sadd.s32 %s22, %s21
          %s123 = smul.addr %s20, 4
          %s124 = sadd.s32 %s122, %s123
          %s125 = smul.addr %s124, 128
          %s126 = scalar_lea.hbm %s0, %s125
          %s127 = sshll.u32 %s118, 4
          %s128 = int_to_ptr.vmem [resolvable:$true] %s127
          %133 = dma.hbm_to_vmem [thread:$0]  %s126, 512, %s128, %s115, 1024, 128, 8
        $region20: #{tpu_custom_call.1} parent=15 // pred_fallthru
          _
      $region16: #{tpu_custom_call.1} parent=5 // pred_fallthru
        _
      %p134 = scmp.le.s32.totalorder 1, %s13
      %p135 = scmp.lt.s32.totalorder %s13, 9
      %p136 = pnand %p134, %p135
      %p137 = pneg %p136
      // Predicated region
      $region21: #{tpu_custom_call.1} parent=5 // pred_check
        _
      $region22: #{tpu_custom_call.1} parent=5 // pred_check_branch
        %139 = sbr.rel (%p136) target = $region24
      $region23: #{tpu_custom_call.1} parent=5 // pred_region
        %s140 = ssub.s32 %s13, 1
        %s141 = sand.u32 %s49, 1
        %s142 = scalar_lea.sflag [#allocation3], %s141
        %s143 = sand.u32 %s49, 1
        %s144 = smul.addr %s143, 32
        %s145 = scalar_lea.vmem [#allocation2], %s144
        // Predicated region
        $region25: #{tpu_custom_call.1} parent=23 // pred_check
          %p146 = pneg %p62
        $region26: #{tpu_custom_call.1} parent=23 // pred_check_branch
          %148 = sbr.rel (%p146) target = $region28
        $region27: #{tpu_custom_call.1} parent=23 // pred_region
          %149 = dma.done %s142, 512
        $region28: #{tpu_custom_call.1} parent=23 // pred_fallthru
          _
        %s150 = sand.u32 %s49, 1
        %s151 = scalar_lea.sflag [#allocation3], %s150
        %s152 = sand.u32 %s49, 1
        %s153 = smul.addr %s152, 32
        %s154 = scalar_lea.vmem [#allocation2], %s153
        %p155 = pneg %p62
        %p156 = pneg %p59
        %p157 = pneg %p92
        %p158 = pneg %p89
        %s159 = sand.u32 %s79, 1
        %s160 = scalar_lea.sflag [#allocation4], %s159
        %s161 = sand.u32 %s79, 1
        %s162 = smul.addr %s161, 32
        %s163 = scalar_lea.vmem [#allocation5], %s162
        %v164 = vld [vmem:[%s145] sm:$0xff]
        %s165 = scalar_lea.vmem %s145, 8 [#allocation2]
        %v166 = vld [vmem:[%s165] sm:$0xff]
        %s167 = scalar_lea.vmem %s145, 16 [#allocation2]
        %v168 = vld [vmem:[%s167] sm:$0xff]
        %s169 = scalar_lea.vmem %s145, 24 [#allocation2]
        %v170 = vld [vmem:[%s169] sm:$0xff]
        %v171 = vadd.f32 %v164, %v166
        %v172 = vmul.f32 %v171, 0.25
        %v173 = vsub.f32 %v164, %v166
        %v174 = vmul.f32 %v173, 0.25
        %v175 = vadd.f32 %v168, %v170
        %v176 = vmul.f32 %v175, 0.25
        %v177 = vsub.f32 %v168, %v170
        %v178 = vmul.f32 %v177, 0.25
        %v179 = vadd.f32 %v172, %v176
        %vm180 = vcmask 64512
        %181 = vst.msk [vmem:[%s163] sm:$0xff] %vm180, %v179
        %v182 = vadd.f32 %v174, %v178
        %s183 = scalar_lea.vmem %s163, 8 [#allocation5]
        %184 = vst.msk [vmem:[%s183] sm:$0xff] %vm180, %v182
        %v185 = vsub.f32 %v172, %v176
        %s186 = scalar_lea.vmem %s163, 16 [#allocation5]
        %187 = vst.msk [vmem:[%s186] sm:$0xff] %vm180, %v185
        %v188 = vsub.f32 %v174, %v178
        %s189 = scalar_lea.vmem %s163, 24 [#allocation5]
        %190 = vst.msk [vmem:[%s189] sm:$0xff] %vm180, %v188
        %s191 = sand.u32 %s79, 1
        %s192 = scalar_lea.sflag [#allocation4], %s191
        %s193 = sand.u32 %s79, 1
        %s194 = smul.addr %s193, 32
        %s195 = scalar_lea.vmem [#allocation5], %s194
        // Predicated region
        $region29: #{tpu_custom_call.1} parent=23 // pred_check
          %p196 = pneg %p89
        $region30: #{tpu_custom_call.1} parent=23 // pred_check_branch
          %198 = sbr.rel (%p196) target = $region32
        $region31: #{tpu_custom_call.1} parent=23 // pred_region
          %s200 = ssub.s32 512, 512
          %201 = vsyncadd %s192, %s200
          %s202 = sadd.s32 %s25, %s24
          %s203 = smul.addr %s23, 16
          %s204 = sadd.s32 %s202, %s203
          %s205 = smul.addr %s204, 128
          %s206 = scalar_lea.hbm %s1, %s205
          %s207 = sshll.u32 %s195, 4
          %s208 = int_to_ptr.vmem [resolvable:$true] %s207
          %213 = dma.vmem_to_hbm [thread:$0]  %s208, 512, %s206, %s192, 128, 512, 8
        $region32: #{tpu_custom_call.1} parent=23 // pred_fallthru
          _
      $region24: #{tpu_custom_call.1} parent=5 // pred_fallthru
        _
      %p214 = scmp.le.s32.totalorder 2, %s13
      // Predicated region
      $region33: #{tpu_custom_call.1} parent=5 // pred_check
        %p215 = pneg %p214
      $region34: #{tpu_custom_call.1} parent=5 // pred_check_branch
        %217 = sbr.rel (%p215) target = $region36
      $region35: #{tpu_custom_call.1} parent=5 // pred_region
        %s218 = ssub.s32 %s13, 2
        // Predicated region
        $region37: #{tpu_custom_call.1} parent=35 // pred_check
          %p219 = pneg %p95
        $region38: #{tpu_custom_call.1} parent=35 // pred_check_branch
          %221 = sbr.rel (%p219) target = $region40
        $region39: #{tpu_custom_call.1} parent=35 // pred_region
          %s222 = sand.u32 %s80, 1
          %s223 = scalar_lea.sflag [#allocation4], %s222
          %s224 = sand.u32 %s80, 1
          %s225 = smul.addr %s224, 32
          %s226 = scalar_lea.vmem [#allocation5], %s225
          %227 = dma.done %s223, 512
        $region40: #{tpu_custom_call.1} parent=35 // pred_fallthru
          _
      $region36: #{tpu_custom_call.1} parent=5 // pred_fallthru
        _
    $region6: #{tpu_custom_call.1} parent=1 // loop_footer
      %s17 = sadd.s32 1, %s13
    $region7: #{tpu_custom_call.1} parent=1 // loop_footer_branch
      %12 = sbr.rel target = $region3
    $region8: #{tpu_custom_call.1} parent=1 // loop_exit
      _
    %228 = vsyncpa [#allocation3], 1
    %s229 = scalar_lea.sflag [#allocation3], 1
    %230 = vsyncpa %s229, 1
    %231 = vsyncpa [#allocation4], 1
    %s232 = scalar_lea.sflag [#allocation4], 1
    %233 = vsyncpa %s232, 1

</llo_original>
